<compile_context>
chip_gen: v7x
topology: tpu7x:2x2x1
jax: 0.10.0
libtpu: 0.0.40
codegen_flags: <defaults>
</compile_context>

<pallas_src>
import jax
import jax.numpy as jnp
from jax.experimental import pallas as pl
from jax.experimental.pallas import tpu as pltpu

_H1 = 8         # fc1 out_features
_H2 = 2         # fc2 out_features (number of classes)
_OUT_PAD = 128  # lane-dense padded output width


def _round_up(n, m):
    return ((n + m - 1) // m) * m


def net_kernel(x_ref, w1_ref, b1_ref, w2_ref, b2_ref, o_ref):
    # --- fc1 + relu on the MXU (f32 accumulate even if x/w1 are bf16) ---
    h = jnp.dot(x_ref[...], w1_ref[...], preferred_element_type=jnp.float32)
    h = jnp.maximum(h + b1_ref[...], 0.0)                       # (TILE_B, 8) f32

    # --- fc2 (8 -> 2) on the VPU: broadcast-multiply + 8-lane reductions ---
    # w2 is stored in torch (out, in) layout, so row c holds class-c weights.
    z0 = jnp.sum(h * w2_ref[0:1, :], axis=-1, keepdims=True) + b2_ref[0]
    z1 = jnp.sum(h * w2_ref[1:2, :], axis=-1, keepdims=True) + b2_ref[1]
    z0 = jnp.maximum(z0, 0.0)                                   # relu before softmax
    z1 = jnp.maximum(z1, 0.0)                                   # (faithful to the module)

    # --- 2-class softmax == numerically stable sigmoid of the logit diff ---
    d = z1 - z0                                                 # (TILE_B, 1)
    pos = d >= 0.0
    e = jnp.exp(jnp.where(pos, -d, d))                          # exp of non-positive -> (0, 1]
    p1 = jnp.where(pos, 1.0 / (1.0 + e), e / (1.0 + e))
    p0 = 1.0 - p1

    # --- lane-dense output slab: class probs in lanes 0/1, zeros elsewhere ---
    lane = jax.lax.broadcasted_iota(jnp.int32, o_ref.shape, 1)
    out = jnp.where(lane == 0, p0, jnp.where(lane == 1, p1, 0.0))
    o_ref[...] = out.astype(o_ref.dtype)


def _pick_tile_b(batch, feat_dim, itemsize):
    # Keep one x block around ~4 MiB so 2x double-buffering (plus the resident
    # weights) fits every generation (v7x: 64 MiB physical / 32 MiB scoped default).
    budget = 4 * 1024 * 1024
    t = (budget // max(1, feat_dim * itemsize)) // 8 * 8
    t = max(8, min(1024, t))
    return min(t, _round_up(batch, 8))


def net_forward(x, w1, b1, w2, b2, *, char_size, embedding_size,
                tile_b=None, mxu_dtype=None):
    """x: (batch, char_size, embedding_size) -> (batch, 2) softmax probs (f32).

    w1: (char_size*embedding_size, 8)  == torch fc1.weight.T
    b1: (1, 8)                         == torch fc1.bias[None, :]
    w2: (2, 8)                         == torch fc2.weight   (out, in)
    b2: (2,)                           == torch fc2.bias
    mxu_dtype: optionally jnp.bfloat16 to run the fc1 matmul in bf16 (v6e/v7x).
    """
    B = x.shape[0]
    D = char_size * embedding_size
    x2 = x.reshape(B, D)   # same semantics as torch .view(-1, char_size*embedding_size)

    if mxu_dtype is not None:
        # bf16 only at the MXU boundary; biases / elementwise math stay f32.
        x2 = x2.astype(mxu_dtype)
        w1 = w1.astype(mxu_dtype)

    if tile_b is None:
        tile_b = _pick_tile_b(B, D, jnp.dtype(x2.dtype).itemsize)
    assert tile_b % 8 == 0, "tile_b must be a multiple of 8 (f32 sublane)"

    B_pad = _round_up(B, tile_b)
    if B_pad != B:
        x2 = jnp.pad(x2, ((0, B_pad - B), (0, 0)))   # padded rows sliced off below

    grid = (B_pad // tile_b,)

    out = pl.pallas_call(
        net_kernel,
        out_shape=jax.ShapeDtypeStruct((B_pad, _OUT_PAD), jnp.float32),
        grid=grid,
        in_specs=[
            pl.BlockSpec((tile_b, D), lambda i: (i, 0)),        # x tile (pipelined)
            pl.BlockSpec((D, _H1), lambda i: (0, 0)),           # w1 (resident)
            pl.BlockSpec((1, _H1), lambda i: (0, 0)),           # b1 (resident)
            pl.BlockSpec((_H2, _H1), lambda i: (0, 0)),         # w2 (resident)
            pl.BlockSpec(memory_space=pltpu.MemorySpace.SMEM),  # b2 scalars
        ],
        out_specs=pl.BlockSpec((tile_b, _OUT_PAD), lambda i: (i, 0)),
        compiler_params=pltpu.CompilerParams(
            dimension_semantics=("parallel",),
        ),
    )(x2, w1, b1, w2, b2)

    return out[:B, :_H2]


if __name__ == "__main__":
    # Small shapes consistent with the module structure (non-multiple batch to
    # exercise padding, tile_b=8 to exercise a multi-step pipelined grid).
    batch = 20
    char_size = 4
    embedding_size = 32
    D = char_size * embedding_size   # fc1 in_features
    H1, H2 = 8, 2

    key = jax.random.PRNGKey(0)
    kx, kw1, kb1, kw2, kb2 = jax.random.split(key, 5)

    x = jax.random.normal(kx, (batch, char_size, embedding_size), dtype=jnp.float32)
    # Linear params (torch: weight (out,in), bias (out,)); fc1 stored transposed.
    w1 = jax.random.normal(kw1, (D, H1), dtype=jnp.float32) * 0.05
    b1 = jax.random.normal(kb1, (1, H1), dtype=jnp.float32) * 0.05
    w2 = jax.random.normal(kw2, (H2, H1), dtype=jnp.float32) * 0.05   # (out, in)
    b2 = jax.random.normal(kb2, (H2,), dtype=jnp.float32) * 0.05

    out = net_forward(x, w1, b1, w2, b2,
                      char_size=char_size, embedding_size=embedding_size,
                      tile_b=8)
    out = jax.block_until_ready(out)

    # Pure-JAX reference (eval-mode dropout == identity).
    xf = x.reshape(batch, D)
    h = jnp.maximum(xf @ w1 + b1, 0.0)
    z = jnp.maximum(h @ w2.T + b2, 0.0)
    ref = jax.nn.softmax(z, axis=-1)

    assert out.shape == (batch, H2)
    assert jnp.allclose(out, ref, atol=1e-5), "mismatch vs reference"

    print("KERNEL_OK")
</pallas_src>

<mosaic_0001>
module attributes {stable_mosaic.version = 11 : i64} {
  func.func @net_kernel(%arg0: i32, %arg1: memref<8x128xf32, #tpu.memory_space<vmem>>, %arg2: memref<128x8xf32, #tpu.memory_space<vmem>>, %arg3: memref<1x8xf32, #tpu.memory_space<vmem>>, %arg4: memref<2x8xf32, #tpu.memory_space<vmem>>, %arg5: memref<2xf32, #tpu.memory_space<smem>>, %arg6: memref<8x128xf32, #tpu.memory_space<vmem>>) attributes {dimension_semantics = [#tpu.dimension_semantics<parallel>], iteration_bounds = array<i64: 3>, scalar_prefetch = 0 : i64, scratch_operands = 0 : i64, tpu.core_type = #tpu.core_type<tc>, window_params = [{transform_indices = @transform_0, window_bounds = array<i64: 8, 128>}, {pipeline_mode = #tpu.pipeline_mode<synchronous>, transform_indices = @transform_1, window_bounds = array<i64: 128, 8>}, {pipeline_mode = #tpu.pipeline_mode<synchronous>, transform_indices = @transform_2, window_bounds = array<i64: 1, 8>}, {pipeline_mode = #tpu.pipeline_mode<synchronous>, transform_indices = @transform_3, window_bounds = array<i64: 2, 8>}, {transform_indices = @transform_4, window_bounds = array<i64: 2>}, {transform_indices = @transform_5, window_bounds = array<i64: 8, 128>}]} {
    %c0 = arith.constant 0 : index
    %c0_0 = arith.constant 0 : index
    %0 = vector.load %arg1[%c0, %c0_0] : memref<8x128xf32, #tpu.memory_space<vmem>>, vector<8x128xf32>
    %c0_1 = arith.constant 0 : index
    %c0_2 = arith.constant 0 : index
    %1 = vector.load %arg2[%c0_1, %c0_2] : memref<128x8xf32, #tpu.memory_space<vmem>>, vector<128x8xf32>
    %cst = arith.constant dense<0.000000e+00> : vector<8x8xf32>
    %2 = tpu.matmul %0, %1, %cst {dimension_numbers = #tpu.dot_dimension_numbers<[1], [0], [0], [1], [0, 0, 1, 1], [], []>} : vector<8x128xf32>, vector<128x8xf32>, vector<8x8xf32> -> vector<8x8xf32>
    %c0_3 = arith.constant 0 : index
    %c0_4 = arith.constant 0 : index
    %3 = vector.load %arg3[%c0_3, %c0_4] : memref<1x8xf32, #tpu.memory_space<vmem>>, vector<1x8xf32>
    %4 = vector.broadcast %3 : vector<1x8xf32> to vector<8x8xf32>
    %5 = arith.addf %2, %4 : vector<8x8xf32>
    %cst_5 = arith.constant 0.000000e+00 : f32
    %6 = vector.broadcast %cst_5 : f32 to vector<8x8xf32>
    %7 = arith.maximumf %5, %6 : vector<8x8xf32>
    %c0_6 = arith.constant 0 : index
    %c0_7 = arith.constant 0 : index
    %8 = vector.load %arg4[%c0_6, %c0_7] : memref<2x8xf32, #tpu.memory_space<vmem>>, vector<1x8xf32>
    %9 = vector.broadcast %8 : vector<1x8xf32> to vector<8x8xf32>
    %10 = arith.mulf %7, %9 : vector<8x8xf32>
    %cst_8 = arith.constant dense<0.000000e+00> : vector<8xf32>
    %11 = vector.multi_reduction <add>, %10, %cst_8 [1] : vector<8x8xf32> to vector<8xf32>
    %12 = vector.shape_cast %11 : vector<8xf32> to vector<8x1xf32>
    %c0_9 = arith.constant 0 : index
    %13 = memref.load %arg5[%c0_9] : memref<2xf32, #tpu.memory_space<smem>>
    %14 = vector.broadcast %13 : f32 to vector<8x1xf32>
    %15 = arith.addf %12, %14 : vector<8x1xf32>
    %c1 = arith.constant 1 : index
    %c0_10 = arith.constant 0 : index
    %16 = vector.load %arg4[%c1, %c0_10] : memref<2x8xf32, #tpu.memory_space<vmem>>, vector<1x8xf32>
    %17 = vector.broadcast %16 : vector<1x8xf32> to vector<8x8xf32>
    %18 = arith.mulf %7, %17 : vector<8x8xf32>
    %cst_11 = arith.constant dense<0.000000e+00> : vector<8xf32>
    %19 = vector.multi_reduction <add>, %18, %cst_11 [1] : vector<8x8xf32> to vector<8xf32>
    %20 = vector.shape_cast %19 : vector<8xf32> to vector<8x1xf32>
    %c1_12 = arith.constant 1 : index
    %21 = memref.load %arg5[%c1_12] : memref<2xf32, #tpu.memory_space<smem>>
    %22 = vector.broadcast %21 : f32 to vector<8x1xf32>
    %23 = arith.addf %20, %22 : vector<8x1xf32>
    %cst_13 = arith.constant 0.000000e+00 : f32
    %24 = vector.broadcast %cst_13 : f32 to vector<8x1xf32>
    %25 = arith.maximumf %15, %24 : vector<8x1xf32>
    %cst_14 = arith.constant 0.000000e+00 : f32
    %26 = vector.broadcast %cst_14 : f32 to vector<8x1xf32>
    %27 = arith.maximumf %23, %26 : vector<8x1xf32>
    %28 = arith.subf %27, %25 : vector<8x1xf32>
    %cst_15 = arith.constant 0.000000e+00 : f32
    %29 = vector.broadcast %cst_15 : f32 to vector<8x1xf32>
    %30 = arith.cmpf oge, %28, %29 : vector<8x1xf32>
    %cst_16 = arith.constant 0.000000e+00 : f32
    %31 = vector.broadcast %cst_16 : f32 to vector<8x1xf32>
    %32 = arith.subf %31, %28 : vector<8x1xf32>
    %33 = arith.select %30, %32, %28 : vector<8x1xi1>, vector<8x1xf32>
    %34 = math.exp %33 : vector<8x1xf32>
    %cst_17 = arith.constant 1.000000e+00 : f32
    %35 = vector.broadcast %cst_17 : f32 to vector<8x1xf32>
    %36 = arith.addf %35, %34 : vector<8x1xf32>
    %cst_18 = arith.constant 1.000000e+00 : f32
    %37 = vector.broadcast %cst_18 : f32 to vector<8x1xf32>
    %38 = arith.divf %37, %36 : vector<8x1xf32>
    %cst_19 = arith.constant 1.000000e+00 : f32
    %39 = vector.broadcast %cst_19 : f32 to vector<8x1xf32>
    %40 = arith.addf %39, %34 : vector<8x1xf32>
    %41 = arith.divf %34, %40 : vector<8x1xf32>
    %42 = arith.select %30, %38, %41 : vector<8x1xi1>, vector<8x1xf32>
    %cst_20 = arith.constant 1.000000e+00 : f32
    %43 = vector.broadcast %cst_20 : f32 to vector<8x1xf32>
    %44 = arith.subf %43, %42 : vector<8x1xf32>
    %45 = tpu.iota {dimensions = array<i32: 1>} : vector<8x128xi32>
    %c0_i32 = arith.constant 0 : i32
    %46 = vector.broadcast %c0_i32 : i32 to vector<8x128xi32>
    %47 = arith.cmpi eq, %45, %46 : vector<8x128xi32>
    %c1_i32 = arith.constant 1 : i32
    %48 = vector.broadcast %c1_i32 : i32 to vector<8x128xi32>
    %49 = arith.cmpi eq, %45, %48 : vector<8x128xi32>
    %cst_21 = arith.constant 0.000000e+00 : f32
    %50 = vector.shape_cast %42 : vector<8x1xf32> to vector<8x1xf32>
    %51 = vector.broadcast %50 : vector<8x1xf32> to vector<8x128xf32>
    %52 = vector.broadcast %cst_21 : f32 to vector<8x128xf32>
    %53 = arith.select %49, %51, %52 : vector<8x128xi1>, vector<8x128xf32>
    %54 = vector.shape_cast %44 : vector<8x1xf32> to vector<8x1xf32>
    %55 = vector.broadcast %54 : vector<8x1xf32> to vector<8x128xf32>
    %56 = arith.select %47, %55, %53 : vector<8x128xi1>, vector<8x128xf32>
    %c0_22 = arith.constant 0 : index
    %c0_23 = arith.constant 0 : index
    %57 = vector.load %arg6[%c0_22, %c0_23] : memref<8x128xf32, #tpu.memory_space<vmem>>, vector<8x128xf32>
    tpu.vector_store %arg6[%c0_22, %c0_23], %56 {strides = array<i32>} : memref<8x128xf32, #tpu.memory_space<vmem>>, vector<8x128xf32>,
    return
  }
  func.func @transform_0(%arg0: i32) -> (i32, i32) {
    %c0_i32 = arith.constant 0 : i32
    %c0_i32_0 = arith.constant 0 : i32
    return %arg0, %c0_i32 : i32, i32
  }
  func.func @transform_1(%arg0: i32) -> (i32, i32) {
    %c0_i32 = arith.constant 0 : i32
    %c0_i32_0 = arith.constant 0 : i32
    %c0_i32_1 = arith.constant 0 : i32
    return %c0_i32, %c0_i32_0 : i32, i32
  }
  func.func @transform_2(%arg0: i32) -> (i32, i32) {
    %c0_i32 = arith.constant 0 : i32
    %c0_i32_0 = arith.constant 0 : i32
    %c0_i32_1 = arith.constant 0 : i32
    return %c0_i32, %c0_i32_0 : i32, i32
  }
  func.func @transform_3(%arg0: i32) -> (i32, i32) {
    %c0_i32 = arith.constant 0 : i32
    %c0_i32_0 = arith.constant 0 : i32
    %c0_i32_1 = arith.constant 0 : i32
    return %c0_i32, %c0_i32_0 : i32, i32
  }
  func.func @transform_4(%arg0: i32) -> i32 {
    %c0_i32 = arith.constant 0 : i32
    %c0_i32_0 = arith.constant 0 : i32
    return %c0_i32 : i32
  }
  func.func @transform_5(%arg0: i32) -> (i32, i32) {
    %c0_i32 = arith.constant 0 : i32
    %c0_i32_0 = arith.constant 0 : i32
    return %arg0, %c0_i32 : i32, i32
  }
}

</mosaic_0001>

<llo_original>
// kernel: tpu_custom_call.1
$region0: #{tpu_custom_call.1}
  #allocation0 [shape = 'u32[]', space=smem, size = 0x4, offset = 0x4, fixed_abs, tag = 'smem constant byte address 0x4 - core index']
  #allocation1 [shape = 'u32[144,128]{1,0:T(1,128)}', space=vmem, size = 0x12000, scoped, tag = 'internal scratch']
  %s0 = inlined_call_operand.vmem [shape: f32[24,128], index: 0, kind: input, shape index: {}]
  %s1 = inlined_call_operand.vmem [shape: f32[128,8], index: 1, kind: input, shape index: {}]
  %s2 = inlined_call_operand.vmem [shape: f32[1,8], index: 2, kind: input, shape index: {}]
  %s3 = inlined_call_operand.vmem [shape: f32[2,8], index: 3, kind: input, shape index: {}]
  %s4 = inlined_call_operand.vmem [shape: f32[2], index: 4, kind: input, shape index: {}]
  %s5 = inlined_call_operand.hbm [shape: f32[24,128], index: 5, kind: output, shape index: {}]
  %s6 = sld [smem:[#allocation0]]
  $region57: #{tpu_custom_call.1} parent=0
    _
  %s8 = ssub.s32 1, %s6
  %s9 = scalar_select 0, %s8, %s6
  $region1: #{tpu_custom_call.1} parent=0
    #allocation2 [shape = 'u8[512]{0}', space=smem, size = 0x200, scoped, tag = 'input window, operand 4, single buffered']
    #allocation3 [shape = 's32[2]{0}', space=sflag, size = 0x8, scoped, tag = 'scoped memory for tpu_custom_call.1']
    #allocation4 [shape = 's32[2]{0}', space=sflag, size = 0x8, scoped, tag = 'scoped memory for tpu_custom_call.1']
    #allocation5 [shape = 'u8[8192]{0}', space=vmem, size = 0x2000, scoped, tag = 'output window, operand 0']
    %10 = vsyncpa [#allocation4], 0
    %11 = vsyncpa [#allocation3], 0
    %s12 = scalar_lea.sflag [#allocation3], 1
    %13 = vsyncpa %s12, 0
    loop: start=0, step=1, limit=5
    $region2: #{tpu_custom_call.1} parent=1 // loop_pre_header
      _
    $region3: #{tpu_custom_call.1} parent=1 // loop_header
      %s15 = sphi 0, %s19
      %p16 = scmp.ge.s32.totalorder %s15, 5
      %s25 = sphi 0, %s27
      %s28 = sphi 0, %s25
      %s29 = sphi 0, %s28
      %s45 = sphi 0, %s29
      %s49 = sphi 0, %s49
      %s51 = sphi 0, %s49
      %s52 = sphi 0, %s51
      %s66 = sphi 0, %s52
      %s70 = sphi 0, %s70
      %s72 = sphi 0, %s70
      %s73 = sphi 0, %s72
      %s87 = sphi 0, %s73
      %s91 = sphi 0, %s91
      %s93 = sphi 0, %s91
      %s94 = sphi 0, %s93
      %s108 = sphi 0, %s94
      %s112 = sphi 0, %s112
      %s114 = sphi 0, %s112
      %s115 = sphi 0, %s114
      %s129 = sphi 0, %s115
      %s135 = sphi 0, %s137
      %s138 = sphi 0, %s135
      %s139 = sphi 0, %s138
      %s155 = sphi 0, %s139
    $region4: #{tpu_custom_call.1} parent=1 // loop_header_branch
      %18 = sbr.rel (%p16) target = $region8
    $region5: #{tpu_custom_call.1} parent=1 // loop_body
      %s20 = ssub.s32 %s15, 1
      %s21 = ssub.s32 %s15, 2
      %s22 = sadd.s32 %s15, 1
      %s23 = ssub.s32 %s15, %s22
      %p24 = scmp.eq.s32.totalorder %s23, 0
      %s26 = sadd.s32 %s25, 1
      %s27 = scalar_select %p24, %s25, %s26
      %p30 = pneg %p24
      %p31 = scmp.eq.s32.totalorder %s15, 2
      %p32 = por %p30, %p31
      %p33 = scmp.ne.s32.totalorder %s25, %s28
      %p34 = scmp.eq.s32.totalorder %s15, 0
      %p35 = por %p33, %p34
      %p36 = scmp.ne.s32.totalorder %s25, %s28
      %p37 = scmp.eq.s32.totalorder %s20, 2
      %p38 = por %p36, %p37
      %p39 = scmp.ne.s32.totalorder %s28, %s29
      %p40 = scmp.eq.s32.totalorder %s20, 0
      %p41 = por %p39, %p40
      %p42 = scmp.ne.s32.totalorder %s28, %s29
      %p43 = scmp.eq.s32.totalorder %s21, 2
      %p44 = por %p42, %p43
      %p46 = scmp.ne.s32.totalorder %s29, %s45
      %p47 = scmp.eq.s32.totalorder %s21, 0
      %p48 = por %p46, %p47
      %s50 = sadd.s32 %s49, 1
      %p53 = scmp.eq.s32.totalorder %s15, 2
      %p54 = scmp.ne.s32.totalorder %s49, %s51
      %p55 = scmp.eq.s32.totalorder %s15, 0
      %p56 = por %p54, %p55
      %p57 = scmp.ne.s32.totalorder %s49, %s51
      %p58 = scmp.eq.s32.totalorder %s20, 2
      %p59 = por %p57, %p58
      %p60 = scmp.ne.s32.totalorder %s51, %s52
      %p61 = scmp.eq.s32.totalorder %s20, 0
      %p62 = por %p60, %p61
      %p63 = scmp.ne.s32.totalorder %s51, %s52
      %p64 = scmp.eq.s32.totalorder %s21, 2
      %p65 = por %p63, %p64
      %p67 = scmp.ne.s32.totalorder %s52, %s66
      %p68 = scmp.eq.s32.totalorder %s21, 0
      %p69 = por %p67, %p68
      %s71 = sadd.s32 %s70, 1
      %p74 = scmp.eq.s32.totalorder %s15, 2
      %p75 = scmp.ne.s32.totalorder %s70, %s72
      %p76 = scmp.eq.s32.totalorder %s15, 0
      %p77 = por %p75, %p76
      %p78 = scmp.ne.s32.totalorder %s70, %s72
      %p79 = scmp.eq.s32.totalorder %s20, 2
      %p80 = por %p78, %p79
      %p81 = scmp.ne.s32.totalorder %s72, %s73
      %p82 = scmp.eq.s32.totalorder %s20, 0
      %p83 = por %p81, %p82
      %p84 = scmp.ne.s32.totalorder %s72, %s73
      %p85 = scmp.eq.s32.totalorder %s21, 2
      %p86 = por %p84, %p85
      %p88 = scmp.ne.s32.totalorder %s73, %s87
      %p89 = scmp.eq.s32.totalorder %s21, 0
      %p90 = por %p88, %p89
      %s92 = sadd.s32 %s91, 1
      %p95 = scmp.eq.s32.totalorder %s15, 2
      %p96 = scmp.ne.s32.totalorder %s91, %s93
      %p97 = scmp.eq.s32.totalorder %s15, 0
      %p98 = por %p96, %p97
      %p99 = scmp.ne.s32.totalorder %s91, %s93
      %p100 = scmp.eq.s32.totalorder %s20, 2
      %p101 = por %p99, %p100
      %p102 = scmp.ne.s32.totalorder %s93, %s94
      %p103 = scmp.eq.s32.totalorder %s20, 0
      %p104 = por %p102, %p103
      %p105 = scmp.ne.s32.totalorder %s93, %s94
      %p106 = scmp.eq.s32.totalorder %s21, 2
      %p107 = por %p105, %p106
      %p109 = scmp.ne.s32.totalorder %s94, %s108
      %p110 = scmp.eq.s32.totalorder %s21, 0
      %p111 = por %p109, %p110
      %s113 = sadd.s32 %s112, 1
      %p116 = scmp.eq.s32.totalorder %s15, 2
      %p117 = scmp.ne.s32.totalorder %s112, %s114
      %p118 = scmp.eq.s32.totalorder %s15, 0
      %p119 = por %p117, %p118
      %p120 = scmp.ne.s32.totalorder %s112, %s114
      %p121 = scmp.eq.s32.totalorder %s20, 2
      %p122 = por %p120, %p121
      %p123 = scmp.ne.s32.totalorder %s114, %s115
      %p124 = scmp.eq.s32.totalorder %s20, 0
      %p125 = por %p123, %p124
      %p126 = scmp.ne.s32.totalorder %s114, %s115
      %p127 = scmp.eq.s32.totalorder %s21, 2
      %p128 = por %p126, %p127
      %p130 = scmp.ne.s32.totalorder %s115, %s129
      %p131 = scmp.eq.s32.totalorder %s21, 0
      %p132 = por %p130, %p131
      %s133 = ssub.s32 %s15, %s22
      %p134 = scmp.eq.s32.totalorder %s133, 0
      %s136 = sadd.s32 %s135, 1
      %s137 = scalar_select %p134, %s135, %s136
      %p140 = pneg %p134
      %p141 = scmp.eq.s32.totalorder %s15, 2
      %p142 = por %p140, %p141
      %p143 = scmp.ne.s32.totalorder %s135, %s138
      %p144 = scmp.eq.s32.totalorder %s15, 0
      %p145 = por %p143, %p144
      %p146 = scmp.ne.s32.totalorder %s135, %s138
      %p147 = scmp.eq.s32.totalorder %s20, 2
      %p148 = por %p146, %p147
      %p149 = scmp.ne.s32.totalorder %s138, %s139
      %p150 = scmp.eq.s32.totalorder %s20, 0
      %p151 = por %p149, %p150
      %p152 = scmp.ne.s32.totalorder %s138, %s139
      %p153 = scmp.eq.s32.totalorder %s21, 2
      %p154 = por %p152, %p153
      %p156 = scmp.ne.s32.totalorder %s139, %s155
      %p157 = scmp.eq.s32.totalorder %s21, 0
      %p158 = por %p156, %p157
      %p159 = scmp.le.s32.totalorder 1, %s15
      %p160 = scmp.lt.s32.totalorder %s15, 4
      %p161 = pnand %p159, %p160
      %p162 = pneg %p161
      // Predicated region
      $region9: #{tpu_custom_call.1} parent=5 // pred_check
        _
      $region10: #{tpu_custom_call.1} parent=5 // pred_check_branch
        %164 = sbr.rel (%p161) target = $region12
      $region11: #{tpu_custom_call.1} parent=5 // pred_region
        %s165 = ssub.s32 %s15, 1
        // Predicated region
        $region13: #{tpu_custom_call.1} parent=11 // pred_check
          %p166 = pneg %p62
        $region14: #{tpu_custom_call.1} parent=11 // pred_check_branch
          %168 = sbr.rel (%p166) target = $region16
        $region15: #{tpu_custom_call.1} parent=11 // pred_region
          _
        $region16: #{tpu_custom_call.1} parent=11 // pred_fallthru
          _
        // Predicated region
        $region17: #{tpu_custom_call.1} parent=11 // pred_check
          %p169 = pneg %p83
        $region18: #{tpu_custom_call.1} parent=11 // pred_check_branch
          %171 = sbr.rel (%p169) target = $region20
        $region19: #{tpu_custom_call.1} parent=11 // pred_region
          _
        $region20: #{tpu_custom_call.1} parent=11 // pred_fallthru
          _
        // Predicated region
        $region21: #{tpu_custom_call.1} parent=11 // pred_check
          %p172 = pneg %p104
        $region22: #{tpu_custom_call.1} parent=11 // pred_check_branch
          %174 = sbr.rel (%p172) target = $region24
        $region23: #{tpu_custom_call.1} parent=11 // pred_region
          _
        $region24: #{tpu_custom_call.1} parent=11 // pred_fallthru
          _
        // Predicated region
        $region25: #{tpu_custom_call.1} parent=11 // pred_check
          %p175 = pneg %p125
        $region26: #{tpu_custom_call.1} parent=11 // pred_check_branch
          %177 = sbr.rel (%p175) target = $region28
        $region27: #{tpu_custom_call.1} parent=11 // pred_region
          %s179 = ssub.s32 16, 16
          %180 = vsyncadd [#allocation4], %s179
          %s182 = sshll.u32 %s4, 4
          %s183 = int_to_ptr.vmem [resolvable:$true] %s182
          %185 = dma.vmem_to_smem %s183, 16, [#allocation2], [#allocation4]
        $region28: #{tpu_custom_call.1} parent=11 // pred_fallthru
          _
      $region12: #{tpu_custom_call.1} parent=5 // pred_fallthru
        _
      %p186 = scmp.lt.s32.totalorder %s15, 3
      // Predicated region
      $region29: #{tpu_custom_call.1} parent=5 // pred_check
        %p187 = pneg %p186
      $region30: #{tpu_custom_call.1} parent=5 // pred_check_branch
        %189 = sbr.rel (%p187) target = $region32
      $region31: #{tpu_custom_call.1} parent=5 // pred_region
        // Predicated region
        $region33: #{tpu_custom_call.1} parent=31 // pred_check
          %p190 = pneg %p35
        $region34: #{tpu_custom_call.1} parent=31 // pred_check_branch
          %192 = sbr.rel (%p190) target = $region36
        $region35: #{tpu_custom_call.1} parent=31 // pred_region
          %p193 = scmp.lt.s32.totalorder %s15, 2
          %s194 = scalar_select %p193, %s15, 2
          %s195 = smul.addr %s194, 8
          %s196 = scalar_lea.vmem %s0, %s195
        $region36: #{tpu_custom_call.1} parent=31 // pred_fallthru
          _
      $region32: #{tpu_custom_call.1} parent=5 // pred_fallthru
        _
      %p197 = scmp.le.s32.totalorder 1, %s15
      %p198 = scmp.lt.s32.totalorder %s15, 4
      %p199 = pnand %p197, %p198
      %p200 = pneg %p199
      // Predicated region
      $region37: #{tpu_custom_call.1} parent=5 // pred_check
        _
      $region38: #{tpu_custom_call.1} parent=5 // pred_check_branch
        %202 = sbr.rel (%p199) target = $region40
      $region39: #{tpu_custom_call.1} parent=5 // pred_region
        %s203 = ssub.s32 %s15, 1
        // Predicated region
        $region41: #{tpu_custom_call.1} parent=39 // pred_check
          %p204 = pneg %p125
        $region42: #{tpu_custom_call.1} parent=39 // pred_check_branch
          %206 = sbr.rel (%p204) target = $region44
        $region43: #{tpu_custom_call.1} parent=39 // pred_region
          %207 = dma.done [#allocation4], 16
        $region44: #{tpu_custom_call.1} parent=39 // pred_fallthru
          _
        %208 = sfence
        %p209 = scmp.lt.s32.totalorder %s20, 2
        %s210 = scalar_select %p209, %s20, 2
        %s211 = smul.addr %s210, 8
        %s212 = scalar_lea.vmem %s0, %s211
        %p213 = pneg %p41
        %p214 = pneg %p38
        %p215 = pneg %p62
        %p216 = pneg %p59
        %p217 = pneg %p83
        %p218 = pneg %p80
        %p219 = pneg %p104
        %p220 = pneg %p101
        %p221 = pneg %p125
        %p222 = pneg %p122
        %p223 = pneg %p151
        %p224 = pneg %p148
        %s225 = sand.u32 %s138, 1
        %s226 = scalar_lea.sflag [#allocation3], %s225
        %s227 = sand.u32 %s138, 1
        %s228 = smul.addr %s227, 8
        %s229 = scalar_lea.vmem [#allocation5], %s228
        %p230 = scmp.lt.s32.totalorder %s20, 2
        %s231 = scalar_select %p230, %s20, 2
        %s232 = smul.addr %s231, 8
        %s233 = scalar_lea.vmem %s0, %s232
        %v234 = vld [vmem:[%s233] sm:$0xff]
        %v235 = vld [vmem:[%s1] sm:$0xff]
        %v236 = vld [vmem:[%s1 + $0x8] sm:$0xff]
        %v237 = vld [vmem:[%s1 + $0x10] sm:$0xff]
        %v238 = vld [vmem:[%s1 + $0x18] sm:$0xff]
        %v239 = vld [vmem:[%s1 + $0x20] sm:$0xff]
        %v240 = vld [vmem:[%s1 + $0x28] sm:$0xff]
        %v241 = vld [vmem:[%s1 + $0x30] sm:$0xff]
        %v242 = vld [vmem:[%s1 + $0x38] sm:$0xff]
        %v243 = vld [vmem:[%s1 + $0x40] sm:$0xff]
        %v244 = vld [vmem:[%s1 + $0x48] sm:$0xff]
        %v245 = vld [vmem:[%s1 + $0x50] sm:$0xff]
        %v246 = vld [vmem:[%s1 + $0x58] sm:$0xff]
        %v247 = vld [vmem:[%s1 + $0x60] sm:$0xff]
        %v248 = vld [vmem:[%s1 + $0x68] sm:$0xff]
        %v249 = vld [vmem:[%s1 + $0x70] sm:$0xff]
        %v250 = vld [vmem:[%s1 + $0x78] sm:$0xff]
        %v251 = vld [vmem:[%s2] sm:$0x1]
        %v253 = vlaneseq
        %v254 = vshrl.u32 %v253, 7
        %v255 = vsub.s32 0, %v254
        %v256 = vrot.slane %v251, %v255
        %258 = vmatprep.subr.mxu0 0.0
        %259 = vmatpush1.msra.mxu0 %v235
        %260 = vmatprep.subr.mxu0 0.0
        %261 = vmatpush1.msra.mxu0 %v236
        %262 = vmatprep.subr.mxu0 0.0
        %263 = vmatpush1.msra.mxu0 %v237
        %264 = vmatprep.subr.mxu0 0.0
        %265 = vmatpush1.msra.mxu0 %v238
        %266 = vmatprep.subr.mxu0 0.0
        %267 = vmatpush1.msra.mxu0 %v239
        %268 = vmatprep.subr.mxu0 0.0
        %269 = vmatpush1.msra.mxu0 %v240
        %270 = vmatprep.subr.mxu0 0.0
        %271 = vmatpush1.msra.mxu0 %v241
        %272 = vmatprep.subr.mxu0 0.0
        %273 = vmatpush1.msra.mxu0 %v242
        %274 = vmatprep.subr.mxu0 0.0
        %275 = vmatpush1.msra.mxu0 %v243
        %276 = vmatprep.subr.mxu0 0.0
        %277 = vmatpush1.msra.mxu0 %v244
        %278 = vmatprep.subr.mxu0 0.0
        %279 = vmatpush1.msra.mxu0 %v245
        %280 = vmatprep.subr.mxu0 0.0
        %281 = vmatpush1.msra.mxu0 %v246
        %282 = vmatprep.subr.mxu0 0.0
        %283 = vmatpush1.msra.mxu0 %v247
        %284 = vmatprep.subr.mxu0 0.0
        %285 = vmatpush1.msra.mxu0 %v248
        %286 = vmatprep.subr.mxu0 0.0
        %287 = vmatpush1.msra.mxu0 %v249
        %288 = vmatprep.subr.mxu0 0.0
        %289 = vmatpush1.msra.mxu0 %v250
        %290 = vmatprep.subr.mxu0 0.0
        %291 = vmatpush1.msra.mxu0 0.0
        %292 = vmatprep.subr.mxu0 0.0
        %293 = vmatpush1.msra.mxu0 0.0
        %294 = vmatprep.subr.mxu0 0.0
        %295 = vmatpush1.msra.mxu0 0.0
        %296 = vmatprep.subr.mxu0 0.0
        %297 = vmatpush1.msra.mxu0 0.0
        %298 = vmatprep.subr.mxu0 0.0
        %299 = vmatpush1.msra.mxu0 0.0
        %300 = vmatprep.subr.mxu0 0.0
        %301 = vmatpush1.msra.mxu0 0.0
        %302 = vmatprep.subr.mxu0 0.0
        %303 = vmatpush1.msra.mxu0 0.0
        %304 = vmatprep.subr.mxu0 0.0
        %305 = vmatpush1.msra.mxu0 0.0
        %306 = vmatprep.subr.mxu0 0.0
        %307 = vmatpush1.msra.mxu0 0.0
        %308 = vmatprep.subr.mxu0 0.0
        %309 = vmatpush1.msra.mxu0 0.0
        %310 = vmatprep.subr.mxu0 0.0
        %311 = vmatpush1.msra.mxu0 0.0
        %312 = vmatprep.subr.mxu0 0.0
        %313 = vmatpush1.msra.mxu0 0.0
        %314 = vmatprep.subr.mxu0 0.0
        %315 = vmatpush1.msra.mxu0 0.0
        %316 = vmatprep.subr.mxu0 0.0
        %317 = vmatpush1.msra.mxu0 0.0
        %318 = vmatprep.subr.mxu0 0.0
        %319 = vmatpush1.msra.mxu0 0.0
        %320 = vmatprep.subr.mxu0 0.0
        %321 = vmatpush1.msra.mxu0 0.0
        %322 = vmatprep.mubr.f32.mxu0 0.0
        %323 = vmatmul.mubr.f32.gmra.mrb[0].mxu0 %v234
        %v324 = vpop.f32.mrb[0].mxu0
        %v325 = vadd.f32 %v256, %v324
        %v326 = vpop.f32.mrb[0].mxu0
        %327 = vdwg.mxu0
        %v328 = vmax.f32 %v325, 0.0
        %v329 = vld [vmem:[%s3] sm:$0x1]
        %v330 = vlaneseq
        %v331 = vshrl.u32 %v330, 7
        %v332 = vsub.s32 0, %v331
        %v333 = vrot.slane %v329, %v332
        %v334 = vmul.f32 %v328, %v333
        %vm335 = vcmask 64512
        %v336 = vsel %vm335, %v334, 0.0
        %337 = vadd.xlane.f32.xlu0 %v336
        %v338 = vpop.xlane.xlu0 %337
        %s339 = sld [smem:[#allocation2]]
        %v340 = vstv %s339
        %v341 = vadd.f32 %v338, %v340
        %v342 = vld [vmem:[%s3 + $0x1] sm:$0x1]
        %v343 = vlaneseq
        %v344 = vshrl.u32 %v343, 7
        %v345 = vsub.s32 0, %v344
        %v346 = vrot.slane %v342, %v345
        %v347 = vmul.f32 %v328, %v346
        %v348 = vsel %vm335, %v347, 0.0
        %349 = vadd.xlane.f32.xlu0 %v348
        %v350 = vpop.xlane.xlu0 %349
        %s351 = sld [smem:[#allocation2 + $0x1]]
        %v352 = vstv %s351
        %v353 = vadd.f32 %v350, %v352
        %v354 = vmax.f32 %v341, 0.0
        %v355 = vmax.f32 %v353, 0.0
        %v356 = vsub.f32 %v355, %v354
        %vm357 = vcmp.ge.f32.partialorder %v356, 0.0
        %v358 = vsub.f32 0.0, %v356
        %v359 = vsel %vm357, %v358, %v356
        %v360 = vmul.f32 %v359, 1.442695
        %v361 = vpow.pop %v360
        %v362 = vadd.f32 %v361, 1.0
        %v363 = vrcp.pop %v362
        %v364 = vmul.f32 1.0, %v363
        %v365 = vmul.f32 %v361, %v363
        %v366 = vsel %vm357, %v364, %v365
        %v367 = vsub.f32 1.0, %v366
        %v368 = vlaneseq
        %v369 = vand.u32 %v368, 127
        %vm370 = vcmp.eq.s32.totalorder %v369, 0
        %vm371 = vcmp.eq.s32.totalorder %v369, 1
        %v372 = vsel %vm371, %v366, 0.0
        %v373 = vsel %vm370, %v367, %v372
        %374 = vst [vmem:[%s229] sm:$0xff] %v373
        %s375 = sand.u32 %s138, 1
        %s376 = scalar_lea.sflag [#allocation3], %s375
        %s377 = sand.u32 %s138, 1
        %s378 = smul.addr %s377, 8
        %s379 = scalar_lea.vmem [#allocation5], %s378
        // Predicated region
        $region45: #{tpu_custom_call.1} parent=39 // pred_check
          %p380 = pneg %p148
        $region46: #{tpu_custom_call.1} parent=39 // pred_check_branch
          %382 = sbr.rel (%p380) target = $region48
        $region47: #{tpu_custom_call.1} parent=39 // pred_region
          %s384 = ssub.s32 128, 128
          %385 = vsyncadd %s376, %s384
          %s386 = smul.addr %s20, 128
          %s387 = scalar_lea.hbm %s5, %s386
          %s389 = sshll.u32 %s379, 4
          %s390 = int_to_ptr.vmem [resolvable:$true] %s389
          %392 = dma.vmem_to_hbm [thread:$0]  %s390, 128, %s387, %s376
        $region48: #{tpu_custom_call.1} parent=39 // pred_fallthru
          _
      $region40: #{tpu_custom_call.1} parent=5 // pred_fallthru
        _
      %p393 = scmp.le.s32.totalorder 2, %s15
      // Predicated region
      $region49: #{tpu_custom_call.1} parent=5 // pred_check
        %p394 = pneg %p393
      $region50: #{tpu_custom_call.1} parent=5 // pred_check_branch
        %396 = sbr.rel (%p394) target = $region52
      $region51: #{tpu_custom_call.1} parent=5 // pred_region
        %s397 = ssub.s32 %s15, 2
        // Predicated region
        $region53: #{tpu_custom_call.1} parent=51 // pred_check
          %p398 = pneg %p154
        $region54: #{tpu_custom_call.1} parent=51 // pred_check_branch
          %400 = sbr.rel (%p398) target = $region56
        $region55: #{tpu_custom_call.1} parent=51 // pred_region
          %s401 = sand.u32 %s139, 1
          %s402 = scalar_lea.sflag [#allocation3], %s401
          %s403 = sand.u32 %s139, 1
          %s404 = smul.addr %s403, 8
          %s405 = scalar_lea.vmem [#allocation5], %s404
          %406 = dma.done %s402, 128
        $region56: #{tpu_custom_call.1} parent=51 // pred_fallthru
          _
      $region52: #{tpu_custom_call.1} parent=5 // pred_fallthru
        _
    $region6: #{tpu_custom_call.1} parent=1 // loop_footer
      %s19 = sadd.s32 1, %s15
    $region7: #{tpu_custom_call.1} parent=1 // loop_footer_branch
      %14 = sbr.rel target = $region3
    $region8: #{tpu_custom_call.1} parent=1 // loop_exit
      _
    %407 = vsyncpa [#allocation3], 1
    %s408 = scalar_lea.sflag [#allocation3], 1
    %409 = vsyncpa %s408, 1
    %410 = vsyncpa [#allocation4], 1
    %s411 = scalar_lea.sflag [#allocation4], 1
    %412 = vsyncpa %s411, 1

</llo_original>
